<compile_context>
chip_gen: v5e
topology: v5e:2x2
jax: 0.10.0
libtpu: 0.0.40
codegen_flags: <defaults>
</compile_context>

<pallas_src>
import functools

import jax
import jax.numpy as jnp
from jax import lax
from jax.experimental import pallas as pl
from jax.experimental.pallas import tpu as pltpu

EPS = 0.0     # GINEConv epsilon (train_eps=False, eps=0.0)
LANE = 128    # TPU lane width; all feature dims are padded to this


def _round_up(v, m):
    return ((v + m - 1) // m) * m


def _pad2d(a, rows, cols):
    r, c = a.shape
    return jnp.pad(a, ((0, rows - r), (0, cols - c)))


# ---------------------------------------------------------------------------
# Per-generation VMEM budget
# ---------------------------------------------------------------------------
_VMEM_LIMIT = None


def _vmem_limit_bytes():
    """~3/4 of physical VMEM, capped at 100 MiB.
    -> ~96 MiB on v5e/v6e (128 MiB parts), ~48 MiB on v7x (64 MiB parts)."""
    global _VMEM_LIMIT
    if _VMEM_LIMIT is None:
        try:
            cap = int(pltpu.get_tpu_info().vmem_capacity_bytes)
        except Exception:
            cap = 64 * 1024 * 1024
        _VMEM_LIMIT = min(100 * 1024 * 1024, (cap * 3) // 4)
    return _VMEM_LIMIT


# ---------------------------------------------------------------------------
# One-time probe: does an in-kernel row gather (jnp.take along axis 0) lower
# on this Mosaic version and match a pure-JAX reference?
# ---------------------------------------------------------------------------
def _take_probe_kernel(idx_ref, x_ref, o_ref):
    o_ref[...] = jnp.take(x_ref[...], idx_ref[0, :], axis=0,
                          mode="promise_in_bounds")


@functools.lru_cache(maxsize=None)
def _take_gather_supported(n_pad, d_in, e_tile):
    try:
        x = (jnp.arange(n_pad * d_in, dtype=jnp.float32)
             .reshape(n_pad, d_in) % 251.0).astype(jnp.bfloat16)
        idx = ((jnp.arange(e_tile, dtype=jnp.int32) * 131 + 17) % n_pad)
        out = pl.pallas_call(
            _take_probe_kernel,
            out_shape=jax.ShapeDtypeStruct((e_tile, d_in), jnp.bfloat16),
            in_specs=[pl.BlockSpec(memory_space=pltpu.MemorySpace.VMEM)] * 2,
            out_specs=pl.BlockSpec(memory_space=pltpu.MemorySpace.VMEM),
        )(idx.reshape(1, e_tile), x)
        ref = jnp.take(x, idx, axis=0)
        return bool(jnp.array_equal(out, ref))
    except Exception:
        return False


# ---------------------------------------------------------------------------
# Kernel 1: edge messages  msg = relu(x[src] + edge_attr @ We + be)
#   grid = (edge_tiles,)  ["parallel"]; x (bf16) is VMEM-resident.
# ---------------------------------------------------------------------------
def _message_kernel_take(src_ref, x_ref, ea_ref, we_ref, be_ref, o_ref):
    x_src = jnp.take(x_ref[...], src_ref[0, :], axis=0,
                     mode="promise_in_bounds").astype(jnp.float32)
    e_proj = jnp.dot(ea_ref[...], we_ref[...],
                     preferred_element_type=jnp.float32) + be_ref[...]
    o_ref[...] = jnp.maximum(x_src + e_proj, 0.0).astype(o_ref.dtype)


def _message_kernel_onehot(src_ref, x_ref, ea_ref, we_ref, be_ref, o_ref):
    # Fallback: MXU one-hot gather (exact in bf16).  Runs once per EDGE tile.
    e_tile = o_ref.shape[0]
    n_pad = x_ref.shape[0]
    oh = jnp.where(
        lax.broadcasted_iota(jnp.int32, (e_tile, n_pad), 1) == src_ref[...],
        1.0, 0.0).astype(jnp.bfloat16)
    x_src = jnp.dot(oh, x_ref[...], preferred_element_type=jnp.float32)
    e_proj = jnp.dot(ea_ref[...], we_ref[...],
                     preferred_element_type=jnp.float32) + be_ref[...]
    o_ref[...] = jnp.maximum(x_src + e_proj, 0.0).astype(o_ref.dtype)


def gine_messages(x_bf16, src_ids, edge_attr_bf16, We_bf16, be, *, e_tile):
    n_pad, d_in = x_bf16.shape
    e_pad, d_e = edge_attr_bf16.shape
    n_edge_tiles = e_pad // e_tile
    use_take = _take_gather_supported(n_pad, d_in, e_tile)

    if use_take:
        kernel = _message_kernel_take
        src_arr = src_ids.reshape(1, e_pad)
        src_spec = pl.BlockSpec((1, e_tile), lambda k: (0, k))
        gather_flops = 0
    else:
        kernel = _message_kernel_onehot
        src_arr = src_ids.reshape(e_pad, 1)
        src_spec = pl.BlockSpec((e_tile, 1), lambda k: (k, 0))
        gather_flops = 2 * e_pad * n_pad * d_in

    flops = int(gather_flops + 2 * e_pad * d_e * d_in)
    bytes_accessed = int(2 * x_bf16.size + 2 * edge_attr_bf16.size
                         + 2 * We_bf16.size + 4 * be.size
                         + 2 * e_pad * d_in + 4 * e_pad)

    return pl.pallas_call(
        kernel,
        out_shape=jax.ShapeDtypeStruct((e_pad, d_in), jnp.bfloat16),
        grid_spec=pltpu.PrefetchScalarGridSpec(
            num_scalar_prefetch=0,
            grid=(n_edge_tiles,),
            in_specs=[
                src_spec,                                        # src ids
                pl.BlockSpec((n_pad, d_in), lambda k: (0, 0)),   # x (bf16, resident)
                pl.BlockSpec((e_tile, d_e), lambda k: (k, 0)),   # edge_attr tile
                pl.BlockSpec((d_e, d_in), lambda k: (0, 0)),     # We (bf16)
                pl.BlockSpec((1, d_in), lambda k: (0, 0)),       # be (f32)
            ],
            out_specs=pl.BlockSpec((e_tile, d_in), lambda k: (k, 0)),
        ),
        compiler_params=pltpu.CompilerParams(
            dimension_semantics=("parallel",),        # edge tiles shard over TCs (v7x)
            vmem_limit_bytes=_vmem_limit_bytes(),
        ),
        cost_estimate=pl.CostEstimate(flops=flops, transcendentals=0,
                                      bytes_accessed=bytes_accessed),
    )(src_arr, x_bf16, edge_attr_bf16, We_bf16, be)


# ---------------------------------------------------------------------------
# Kernel 2: scatter-add of messages + GINE MLP + outer activation
#   grid = (node_tiles ["parallel"], edge_tiles ["arbitrary" reduction, last])
# ---------------------------------------------------------------------------
def _scatter_mlp_kernel(dst_ref, msg_ref, x_ref, w1_ref, b1_ref, w2_ref, b2_ref,
                        o_ref, acc_ref):
    i = pl.program_id(0)                      # node tile (parallel)
    k = pl.program_id(1)                      # edge tile (reduction, last axis)
    n_tile = acc_ref.shape[0]
    e_tile = msg_ref.shape[0]

    @pl.when(k == 0)
    def _():
        acc_ref[...] = jnp.zeros_like(acc_ref)

    # scatter-add via one-hot MXU segment-sum: [Tn, Te](bf16) @ [Te, D](bf16)
    node_ids = lax.broadcasted_iota(jnp.int32, (n_tile, e_tile), 0) + i * n_tile
    scatter_oh = jnp.where(node_ids == dst_ref[...], 1.0, 0.0).astype(jnp.bfloat16)
    acc_ref[...] += jnp.dot(scatter_oh, msg_ref[...],
                            preferred_element_type=jnp.float32)

    # finalize: (1+eps)*x + agg, GINE MLP (BN folded away), outer ReLU
    @pl.when(k == pl.num_programs(1) - 1)
    def _():
        h = (1.0 + EPS) * x_ref[...] + acc_ref[...]
        h1 = jnp.maximum(
            jnp.dot(h.astype(jnp.bfloat16), w1_ref[...],
                    preferred_element_type=jnp.float32) + b1_ref[...], 0.0)
        h2 = jnp.dot(h1.astype(jnp.bfloat16), w2_ref[...],
                     preferred_element_type=jnp.float32) + b2_ref[...]
        o_ref[...] = jnp.maximum(h2, 0.0)     # outer self.act; dropout p=0 no-op


def gine_scatter_mlp(x_f32, dst_row, msg, W1_bf16, b1, W2_bf16, b2,
                     *, n_tile, e_tile):
    n_pad, d_in = x_f32.shape
    e_pad = msg.shape[0]
    d_h = W2_bf16.shape[1]
    n_node_tiles = n_pad // n_tile
    n_edge_tiles = e_pad // e_tile

    flops = int(2 * n_pad * e_pad * d_in
                + 2 * n_pad * (d_in * d_h + d_h * d_h))
    bytes_accessed = int(n_node_tiles * (2 * e_pad * d_in + 4 * e_pad)
                         + 4 * x_f32.size + 4 * n_pad * d_h
                         + 2 * (W1_bf16.size + W2_bf16.size)
                         + 4 * (b1.size + b2.size))

    return pl.pallas_call(
        _scatter_mlp_kernel,
        out_shape=jax.ShapeDtypeStruct((n_pad, d_h), jnp.float32),
        grid_spec=pltpu.PrefetchScalarGridSpec(
            num_scalar_prefetch=0,
            grid=(n_node_tiles, n_edge_tiles),
            in_specs=[
                pl.BlockSpec((1, e_tile), lambda i, k: (0, k)),     # dst ids
                pl.BlockSpec((e_tile, d_in), lambda i, k: (k, 0)),  # msg tile (bf16)
                pl.BlockSpec((n_tile, d_in), lambda i, k: (i, 0)),  # x tile (f32, finalize)
                pl.BlockSpec((d_in, d_h), lambda i, k: (0, 0)),     # W1 (bf16)
                pl.BlockSpec((1, d_h), lambda i, k: (0, 0)),        # b1
                pl.BlockSpec((d_h, d_h), lambda i, k: (0, 0)),      # W2 (bf16)
                pl.BlockSpec((1, d_h), lambda i, k: (0, 0)),        # b2
            ],
            out_specs=pl.BlockSpec((n_tile, d_h), lambda i, k: (i, 0)),
            scratch_shapes=[pltpu.VMEM((n_tile, d_in), jnp.float32)],
        ),
        compiler_params=pltpu.CompilerParams(
            dimension_semantics=("parallel", "arbitrary"),
            vmem_limit_bytes=_vmem_limit_bytes(),
        ),
        cost_estimate=pl.CostEstimate(flops=flops, transcendentals=0,
                                      bytes_accessed=bytes_accessed),
    )(dst_row, msg, x_f32, W1_bf16, b1, W2_bf16, b2)


# ---------------------------------------------------------------------------
# Kernel 3: global_add_pool + classifier MLP (norm=None): Linear -> relu -> Linear
#   grid = (node_tiles,) reduction with persistent f32 pooled accumulator.
# ---------------------------------------------------------------------------
def _pool_classifier_kernel(batch_ref, x_ref, wc1_ref, bc1_ref, wc2_ref, bc2_ref,
                            o_ref, pooled_ref):
    j = pl.program_id(0)
    g_pad = pooled_ref.shape[0]
    n_tile = x_ref.shape[0]

    @pl.when(j == 0)
    def _():
        pooled_ref[...] = jnp.zeros_like(pooled_ref)

    gids = lax.broadcasted_iota(jnp.int32, (g_pad, n_tile), 0)
    pool_oh = jnp.where(gids == batch_ref[...], 1.0, 0.0)        # exact in f32
    pooled_ref[...] += jnp.dot(pool_oh, x_ref[...],
                               preferred_element_type=jnp.float32)

    @pl.when(j == pl.num_programs(0) - 1)
    def _():
        h = jnp.maximum(
            jnp.dot(pooled_ref[...], wc1_ref[...],
                    preferred_element_type=jnp.float32) + bc1_ref[...], 0.0)
        o_ref[...] = jnp.dot(h, wc2_ref[...],
                             preferred_element_type=jnp.float32) + bc2_ref[...]


def pool_classifier(x, batch_row, Wc1, bc1, Wc2, bc2, *, g_pad, n_tile):
    n_pad, d_h = x.shape
    c_p = Wc2.shape[1]
    n_node_tiles = n_pad // n_tile
    flops = int(2 * g_pad * n_pad * d_h + 2 * g_pad * (d_h * d_h + d_h * c_p))
    bytes_accessed = int(4 * (x.size + batch_row.size + Wc1.size + Wc2.size
                              + bc1.size + bc2.size + g_pad * c_p))
    return pl.pallas_call(
        _pool_classifier_kernel,
        out_shape=jax.ShapeDtypeStruct((g_pad, c_p), jnp.float32),
        grid_spec=pltpu.PrefetchScalarGridSpec(
            num_scalar_prefetch=0,
            grid=(n_node_tiles,),
            in_specs=[
                pl.BlockSpec((1, n_tile), lambda j: (0, j)),    # batch ids
                pl.BlockSpec((n_tile, d_h), lambda j: (j, 0)),  # node features
                pl.BlockSpec((d_h, d_h), lambda j: (0, 0)),     # Wc1
                pl.BlockSpec((1, d_h), lambda j: (0, 0)),       # bc1
                pl.BlockSpec((d_h, c_p), lambda j: (0, 0)),     # Wc2
                pl.BlockSpec((1, c_p), lambda j: (0, 0)),       # bc2
            ],
            out_specs=pl.BlockSpec((g_pad, c_p), lambda j: (0, 0)),
            scratch_shapes=[pltpu.VMEM((g_pad, d_h), jnp.float32)],
        ),
        compiler_params=pltpu.CompilerParams(
            dimension_semantics=("arbitrary",),
            vmem_limit_bytes=_vmem_limit_bytes(),
        ),
        cost_estimate=pl.CostEstimate(flops=flops, transcendentals=0,
                                      bytes_accessed=bytes_accessed),
    )(batch_row, x, Wc1, bc1, Wc2, bc2)


# ---------------------------------------------------------------------------
# Parameter setup (weights zero-padded to lane-dense 128 dims; matmul weights bf16)
# ---------------------------------------------------------------------------
def init_params(key, in_channels, hidden, out_channels, num_layers, edge_dim):
    d_in_p = _round_up(in_channels, LANE)
    d_h_p = _round_up(hidden, LANE)
    d_e_p = _round_up(edge_dim, LANE)
    c_p = _round_up(out_channels, LANE)
    params = {"convs": [], "out_channels": out_channels,
              "d_in_p": d_in_p, "d_h_p": d_h_p, "d_e_p": d_e_p, "c_p": c_p}
    for i in range(num_layers):
        d_in = in_channels if i == 0 else hidden
        d_in_pad = d_in_p if i == 0 else d_h_p
        key, k1, k2, k3 = jax.random.split(key, 4)
        conv = {
            "We": _pad2d(0.1 * jax.random.normal(k1, (edge_dim, d_in), jnp.float32),
                         d_e_p, d_in_pad).astype(jnp.bfloat16),
            "be": jnp.zeros((1, d_in_pad), jnp.float32),
            "W1": _pad2d(0.1 * jax.random.normal(k2, (d_in, hidden), jnp.float32),
                         d_in_pad, d_h_p).astype(jnp.bfloat16),
            "b1": jnp.zeros((1, d_h_p), jnp.float32),
            "W2": _pad2d(0.1 * jax.random.normal(k3, (hidden, hidden), jnp.float32),
                         d_h_p, d_h_p).astype(jnp.bfloat16),
            "b2": jnp.zeros((1, d_h_p), jnp.float32),
        }
        params["convs"].append(conv)
    key, k1, k2 = jax.random.split(key, 3)
    params["classifier"] = {
        "Wc1": _pad2d(0.1 * jax.random.normal(k1, (hidden, hidden), jnp.float32),
                      d_h_p, d_h_p),
        "bc1": jnp.zeros((1, d_h_p), jnp.float32),
        "Wc2": _pad2d(0.1 * jax.random.normal(k2, (hidden, out_channels), jnp.float32),
                      d_h_p, c_p),
        "bc2": jnp.zeros((1, c_p), jnp.float32),
    }
    return params


# ---------------------------------------------------------------------------
# Forward wrapper: padding + per-layer kernel calls (glue only)
# ---------------------------------------------------------------------------
def distributed_gine_forward(params, x, edge_index, edge_attr, batch, num_graphs,
                             *, n_tile=256, e_tile=512):
    n_real = x.shape[0]
    e_real = edge_index.shape[1]
    d_in_p = params["d_in_p"]
    d_e_p = params["d_e_p"]

    n_pad = _round_up(max(n_real, n_tile), n_tile)
    e_pad = _round_up(max(e_real, e_tile), e_tile)

    x_p = jnp.pad(x, ((0, n_pad - n_real), (0, d_in_p - x.shape[1])))
    ea_bf16 = jnp.pad(edge_attr, ((0, e_pad - e_real),
                                  (0, d_e_p - edge_attr.shape[1]))
                      ).astype(jnp.bfloat16)          # cast once, reused every layer

    src = edge_index[0].astype(jnp.int32)
    dst = edge_index[1].astype(jnp.int32)
    # padded edges: src -> node 0 (harmless gather), dst -> -1 (scatters nowhere)
    src_ids = jnp.pad(src, (0, e_pad - e_real), constant_values=0)
    dst_row = jnp.pad(dst, (0, e_pad - e_real), constant_values=-1).reshape(1, e_pad)
    # padded nodes: batch id -1 -> excluded from pooling
    batch_row = jnp.pad(batch.astype(jnp.int32), (0, n_pad - n_real),
                        constant_values=-1).reshape(1, n_pad)

    # TODO(synk): DGL DistEmbedding / DistTensor remote lookups have no Pallas
    # equivalent; dense in-memory features are used instead (same math).
    h = x_p
    for conv in params["convs"]:
        h_bf16 = h.astype(jnp.bfloat16)     # one cast per layer, not per grid step
        msg = gine_messages(h_bf16, src_ids, ea_bf16, conv["We"], conv["be"],
                            e_tile=e_tile)
        h = gine_scatter_mlp(h, dst_row, msg, conv["W1"], conv["b1"],
                             conv["W2"], conv["b2"],
                             n_tile=n_tile, e_tile=e_tile)

    g_pad = _round_up(max(num_graphs, 8), 8)
    cls = params["classifier"]
    out_p = pool_classifier(h, batch_row, cls["Wc1"], cls["bc1"],
                            cls["Wc2"], cls["bc2"], g_pad=g_pad, n_tile=n_tile)
    return out_p[:num_graphs, :params["out_channels"]]


# ---------------------------------------------------------------------------
# Pure-JAX f32 reference (same padded weights; tolerance check for bf16 msgs)
# ---------------------------------------------------------------------------
def reference_forward(params, x, edge_index, edge_attr, batch, num_graphs):
    h = jnp.pad(x, ((0, 0), (0, params["d_in_p"] - x.shape[1])))
    ea = jnp.pad(edge_attr, ((0, 0), (0, params["d_e_p"] - edge_attr.shape[1])))
    src, dst = edge_index[0], edge_index[1]
    n = h.shape[0]
    for conv in params["convs"]:
        e_proj = ea @ conv["We"].astype(jnp.float32) + conv["be"]
        msg = jnp.maximum(h[src] + e_proj, 0.0)
        agg = jax.ops.segment_sum(msg, dst, num_segments=n)
        z = (1.0 + EPS) * h + agg
        z = jnp.maximum(z @ conv["W1"].astype(jnp.float32) + conv["b1"], 0.0)
        z = z @ conv["W2"].astype(jnp.float32) + conv["b2"]
        h = jnp.maximum(z, 0.0)
    pooled = jax.ops.segment_sum(h, batch, num_segments=num_graphs)
    cls = params["classifier"]
    z = jnp.maximum(pooled @ cls["Wc1"] + cls["bc1"], 0.0)
    return (z @ cls["Wc2"] + cls["bc2"])[:, :params["out_channels"]]


if __name__ == "__main__":
    # small, module-consistent shapes (multi-tile grids at test tile sizes)
    IN_CHANNELS = 8
    HIDDEN = 32
    OUT_CHANNELS = 4
    NUM_LAYERS = 2
    EDGE_DIM = 6
    N_NODES = 200          # padded to 256 -> 2 node tiles of 128
    N_EDGES = 700          # padded to 768 -> 3 edge tiles of 256
    NUM_GRAPHS = 2
    N_TILE = 128           # production defaults are 256 / 512
    E_TILE = 256

    key = jax.random.PRNGKey(0)
    key, kx, ke, ks, kd = jax.random.split(key, 5)
    x = jax.random.normal(kx, (N_NODES, IN_CHANNELS), jnp.float32)
    edge_attr = jax.random.normal(ke, (N_EDGES, EDGE_DIM), jnp.float32)
    edge_index = jnp.stack([
        jax.random.randint(ks, (N_EDGES,), 0, N_NODES),
        jax.random.randint(kd, (N_EDGES,), 0, N_NODES),
    ], axis=0).astype(jnp.int32)                             # [2, E]
    batch = (jnp.arange(N_NODES) >= N_NODES // 2).astype(jnp.int32)   # 2 graphs

    params = init_params(key, IN_CHANNELS, HIDDEN, OUT_CHANNELS, NUM_LAYERS,
                         EDGE_DIM)

    out = distributed_gine_forward(params, x, edge_index, edge_attr, batch,
                                   NUM_GRAPHS, n_tile=N_TILE, e_tile=E_TILE)
    out = jax.block_until_ready(out)
    assert out.shape == (NUM_GRAPHS, OUT_CHANNELS)

    ref = reference_forward(params, x, edge_index, edge_attr, batch, NUM_GRAPHS)
    max_err = float(jnp.max(jnp.abs(out - ref)))
    assert jnp.allclose(out, ref, rtol=5e-2, atol=7.5e-1), f"max_abs_err={max_err}"
    print("KERNEL_OK")
</pallas_src>

<mosaic_0001>
module attributes {stable_mosaic.version = 11 : i64} {
  func.func @_message_kernel_onehot(%arg0: i32, %arg1: memref<256x1xi32, #tpu.memory_space<vmem>>, %arg2: memref<256x128xbf16, #tpu.memory_space<vmem>>, %arg3: memref<256x128xbf16, #tpu.memory_space<vmem>>, %arg4: memref<128x128xbf16, #tpu.memory_space<vmem>>, %arg5: memref<1x128xf32, #tpu.memory_space<vmem>>, %arg6: memref<256x128xbf16, #tpu.memory_space<vmem>>) attributes {dimension_semantics = [#tpu.dimension_semantics<parallel>], iteration_bounds = array<i64: 3>, scalar_prefetch = 0 : i64, scratch_operands = 0 : i64, tpu.core_type = #tpu.core_type<tc>, window_params = [{transform_indices = @transform_0, window_bounds = array<i64: 256, 1>}, {pipeline_mode = #tpu.pipeline_mode<synchronous>, transform_indices = @transform_1, window_bounds = array<i64: 256, 128>}, {transform_indices = @transform_2, window_bounds = array<i64: 256, 128>}, {pipeline_mode = #tpu.pipeline_mode<synchronous>, transform_indices = @transform_3, window_bounds = array<i64: 128, 128>}, {pipeline_mode = #tpu.pipeline_mode<synchronous>, transform_indices = @transform_4, window_bounds = array<i64: 1, 128>}, {transform_indices = @transform_5, window_bounds = array<i64: 256, 128>}]} {
    %0 = tpu.iota {dimensions = array<i32: 1>} : vector<256x256xi32>
    %c0 = arith.constant 0 : index
    %c0_0 = arith.constant 0 : index
    %1 = vector.load %arg1[%c0, %c0_0] : memref<256x1xi32, #tpu.memory_space<vmem>>, vector<256x1xi32>
    %2 = vector.broadcast %1 : vector<256x1xi32> to vector<256x256xi32>
    %3 = arith.cmpi eq, %0, %2 : vector<256x256xi32>
    %cst = arith.constant 1.000000e+00 : f32
    %cst_1 = arith.constant 0.000000e+00 : f32
    %4 = vector.broadcast %cst : f32 to vector<256x256xf32>
    %5 = vector.broadcast %cst_1 : f32 to vector<256x256xf32>
    %6 = arith.select %3, %4, %5 : vector<256x256xi1>, vector<256x256xf32>
    %7 = arith.truncf %6 : vector<256x256xf32> to vector<256x256xbf16>
    %c0_2 = arith.constant 0 : index
    %c0_3 = arith.constant 0 : index
    %8 = vector.load %arg2[%c0_2, %c0_3] : memref<256x128xbf16, #tpu.memory_space<vmem>>, vector<256x128xbf16>
    %cst_4 = arith.constant dense<0.000000e+00> : vector<256x128xf32>
    %9 = tpu.matmul %7, %8, %cst_4 {dimension_numbers = #tpu.dot_dimension_numbers<[1], [0], [0], [1], [0, 0, 1, 1], [], []>} : vector<256x256xbf16>, vector<256x128xbf16>, vector<256x128xf32> -> vector<256x128xf32>
    %c0_5 = arith.constant 0 : index
    %c0_6 = arith.constant 0 : index
    %10 = vector.load %arg3[%c0_5, %c0_6] : memref<256x128xbf16, #tpu.memory_space<vmem>>, vector<256x128xbf16>
    %c0_7 = arith.constant 0 : index
    %c0_8 = arith.constant 0 : index
    %11 = vector.load %arg4[%c0_7, %c0_8] : memref<128x128xbf16, #tpu.memory_space<vmem>>, vector<128x128xbf16>
    %cst_9 = arith.constant dense<0.000000e+00> : vector<256x128xf32>
    %12 = tpu.matmul %10, %11, %cst_9 {dimension_numbers = #tpu.dot_dimension_numbers<[1], [0], [0], [1], [0, 0, 1, 1], [], []>} : vector<256x128xbf16>, vector<128x128xbf16>, vector<256x128xf32> -> vector<256x128xf32>
    %c0_10 = arith.constant 0 : index
    %c0_11 = arith.constant 0 : index
    %13 = vector.load %arg5[%c0_10, %c0_11] : memref<1x128xf32, #tpu.memory_space<vmem>>, vector<1x128xf32>
    %14 = vector.broadcast %13 : vector<1x128xf32> to vector<256x128xf32>
    %15 = arith.addf %12, %14 : vector<256x128xf32>
    %16 = arith.addf %9, %15 : vector<256x128xf32>
    %cst_12 = arith.constant 0.000000e+00 : f32
    %17 = vector.broadcast %cst_12 : f32 to vector<256x128xf32>
    %18 = arith.maximumf %16, %17 : vector<256x128xf32>
    %19 = arith.truncf %18 : vector<256x128xf32> to vector<256x128xbf16>
    %c0_13 = arith.constant 0 : index
    %c0_14 = arith.constant 0 : index
    %20 = vector.load %arg6[%c0_13, %c0_14] : memref<256x128xbf16, #tpu.memory_space<vmem>>, vector<256x128xbf16>
    tpu.vector_store %arg6[%c0_13, %c0_14], %19 {strides = array<i32>} : memref<256x128xbf16, #tpu.memory_space<vmem>>, vector<256x128xbf16>,
    return
  }
  func.func @transform_0(%arg0: i32) -> (i32, i32) {
    %c0_i32 = arith.constant 0 : i32
    %c0_i32_0 = arith.constant 0 : i32
    return %arg0, %c0_i32 : i32, i32
  }
  func.func @transform_1(%arg0: i32) -> (i32, i32) {
    %c0_i32 = arith.constant 0 : i32
    %c0_i32_0 = arith.constant 0 : i32
    %c0_i32_1 = arith.constant 0 : i32
    return %c0_i32, %c0_i32_0 : i32, i32
  }
  func.func @transform_2(%arg0: i32) -> (i32, i32) {
    %c0_i32 = arith.constant 0 : i32
    %c0_i32_0 = arith.constant 0 : i32
    return %arg0, %c0_i32 : i32, i32
  }
  func.func @transform_3(%arg0: i32) -> (i32, i32) {
    %c0_i32 = arith.constant 0 : i32
    %c0_i32_0 = arith.constant 0 : i32
    %c0_i32_1 = arith.constant 0 : i32
    return %c0_i32, %c0_i32_0 : i32, i32
  }
  func.func @transform_4(%arg0: i32) -> (i32, i32) {
    %c0_i32 = arith.constant 0 : i32
    %c0_i32_0 = arith.constant 0 : i32
    %c0_i32_1 = arith.constant 0 : i32
    return %c0_i32, %c0_i32_0 : i32, i32
  }
  func.func @transform_5(%arg0: i32) -> (i32, i32) {
    %c0_i32 = arith.constant 0 : i32
    %c0_i32_0 = arith.constant 0 : i32
    return %arg0, %c0_i32 : i32, i32
  }
}

</mosaic_0001>

<llo_original>
// kernel: tpu_custom_call.1
$region0: #{tpu_custom_call.1}
  #allocation0 [shape = 'u32[]', space=smem, size = 0x4, offset = 0x4, fixed_abs, tag = 'smem constant byte address 0x4 - core index']
  #allocation1 [shape = 'u32[72,128]{1,0:T(1,128)}', space=vmem, size = 0x9000, scoped, tag = 'internal scratch']
  %s0 = inlined_call_operand.vmem [shape: s32[768,1], index: 0, kind: input, shape index: {}]
  %s1 = inlined_call_operand.vmem [shape: bf16[256,128], index: 1, kind: input, shape index: {}]
  %s2 = inlined_call_operand.vmem [shape: bf16[768,128], index: 2, kind: input, shape index: {}]
  %s3 = inlined_call_operand.vmem [shape: bf16[128,128], index: 3, kind: input, shape index: {}]
  %s4 = inlined_call_operand.vmem [shape: f32[1,128], index: 4, kind: input, shape index: {}]
  %s5 = inlined_call_operand.hbm [shape: bf16[768,128], index: 5, kind: output, shape index: {}]
  %s6 = sld [smem:[#allocation0]]
  $region53: #{tpu_custom_call.1} parent=0
    _
  %s8 = ssub.s32 1, %s6
  %s9 = scalar_select 0, %s8, %s6
  $region1: #{tpu_custom_call.1} parent=0
    #allocation2 [shape = 'u8[131072]{0}', space=vmem, size = 0x20000, scoped, tag = 'output window, operand 0']
    #allocation3 [shape = 's32[2]{0}', space=sflag, size = 0x8, scoped, tag = 'scoped memory for tpu_custom_call.1']
    %10 = vsyncpa [#allocation3], 0
    %s11 = scalar_lea.sflag [#allocation3], 1
    %12 = vsyncpa %s11, 0
    loop: start=0, step=1, limit=5
    $region2: #{tpu_custom_call.1} parent=1 // loop_pre_header
      _
    $region3: #{tpu_custom_call.1} parent=1 // loop_header
      %s14 = sphi 0, %s18
      %p15 = scmp.ge.s32.totalorder %s14, 5
      %s24 = sphi 0, %s26
      %s27 = sphi 0, %s24
      %s28 = sphi 0, %s27
      %s44 = sphi 0, %s28
      %s48 = sphi 0, %s48
      %s50 = sphi 0, %s48
      %s51 = sphi 0, %s50
      %s65 = sphi 0, %s51
      %s71 = sphi 0, %s73
      %s74 = sphi 0, %s71
      %s75 = sphi 0, %s74
      %s91 = sphi 0, %s75
      %s95 = sphi 0, %s95
      %s97 = sphi 0, %s95
      %s98 = sphi 0, %s97
      %s112 = sphi 0, %s98
      %s116 = sphi 0, %s116
      %s118 = sphi 0, %s116
      %s119 = sphi 0, %s118
      %s133 = sphi 0, %s119
      %s139 = sphi 0, %s141
      %s142 = sphi 0, %s139
      %s143 = sphi 0, %s142
      %s159 = sphi 0, %s143
    $region4: #{tpu_custom_call.1} parent=1 // loop_header_branch
      %17 = sbr.rel (%p15) target = $region8
    $region5: #{tpu_custom_call.1} parent=1 // loop_body
      %s19 = ssub.s32 %s14, 1
      %s20 = ssub.s32 %s14, 2
      %s21 = sadd.s32 %s14, 1
      %s22 = ssub.s32 %s14, %s21
      %p23 = scmp.eq.s32.totalorder %s22, 0
      %s25 = sadd.s32 %s24, 1
      %s26 = scalar_select %p23, %s24, %s25
      %p29 = pneg %p23
      %p30 = scmp.eq.s32.totalorder %s14, 2
      %p31 = por %p29, %p30
      %p32 = scmp.ne.s32.totalorder %s24, %s27
      %p33 = scmp.eq.s32.totalorder %s14, 0
      %p34 = por %p32, %p33
      %p35 = scmp.ne.s32.totalorder %s24, %s27
      %p36 = scmp.eq.s32.totalorder %s19, 2
      %p37 = por %p35, %p36
      %p38 = scmp.ne.s32.totalorder %s27, %s28
      %p39 = scmp.eq.s32.totalorder %s19, 0
      %p40 = por %p38, %p39
      %p41 = scmp.ne.s32.totalorder %s27, %s28
      %p42 = scmp.eq.s32.totalorder %s20, 2
      %p43 = por %p41, %p42
      %p45 = scmp.ne.s32.totalorder %s28, %s44
      %p46 = scmp.eq.s32.totalorder %s20, 0
      %p47 = por %p45, %p46
      %s49 = sadd.s32 %s48, 1
      %p52 = scmp.eq.s32.totalorder %s14, 2
      %p53 = scmp.ne.s32.totalorder %s48, %s50
      %p54 = scmp.eq.s32.totalorder %s14, 0
      %p55 = por %p53, %p54
      %p56 = scmp.ne.s32.totalorder %s48, %s50
      %p57 = scmp.eq.s32.totalorder %s19, 2
      %p58 = por %p56, %p57
      %p59 = scmp.ne.s32.totalorder %s50, %s51
      %p60 = scmp.eq.s32.totalorder %s19, 0
      %p61 = por %p59, %p60
      %p62 = scmp.ne.s32.totalorder %s50, %s51
      %p63 = scmp.eq.s32.totalorder %s20, 2
      %p64 = por %p62, %p63
      %p66 = scmp.ne.s32.totalorder %s51, %s65
      %p67 = scmp.eq.s32.totalorder %s20, 0
      %p68 = por %p66, %p67
      %s69 = ssub.s32 %s14, %s21
      %p70 = scmp.eq.s32.totalorder %s69, 0
      %s72 = sadd.s32 %s71, 1
      %s73 = scalar_select %p70, %s71, %s72
      %p76 = pneg %p70
      %p77 = scmp.eq.s32.totalorder %s14, 2
      %p78 = por %p76, %p77
      %p79 = scmp.ne.s32.totalorder %s71, %s74
      %p80 = scmp.eq.s32.totalorder %s14, 0
      %p81 = por %p79, %p80
      %p82 = scmp.ne.s32.totalorder %s71, %s74
      %p83 = scmp.eq.s32.totalorder %s19, 2
      %p84 = por %p82, %p83
      %p85 = scmp.ne.s32.totalorder %s74, %s75
      %p86 = scmp.eq.s32.totalorder %s19, 0
      %p87 = por %p85, %p86
      %p88 = scmp.ne.s32.totalorder %s74, %s75
      %p89 = scmp.eq.s32.totalorder %s20, 2
      %p90 = por %p88, %p89
      %p92 = scmp.ne.s32.totalorder %s75, %s91
      %p93 = scmp.eq.s32.totalorder %s20, 0
      %p94 = por %p92, %p93
      %s96 = sadd.s32 %s95, 1
      %p99 = scmp.eq.s32.totalorder %s14, 2
      %p100 = scmp.ne.s32.totalorder %s95, %s97
      %p101 = scmp.eq.s32.totalorder %s14, 0
      %p102 = por %p100, %p101
      %p103 = scmp.ne.s32.totalorder %s95, %s97
      %p104 = scmp.eq.s32.totalorder %s19, 2
      %p105 = por %p103, %p104
      %p106 = scmp.ne.s32.totalorder %s97, %s98
      %p107 = scmp.eq.s32.totalorder %s19, 0
      %p108 = por %p106, %p107
      %p109 = scmp.ne.s32.totalorder %s97, %s98
      %p110 = scmp.eq.s32.totalorder %s20, 2
      %p111 = por %p109, %p110
      %p113 = scmp.ne.s32.totalorder %s98, %s112
      %p114 = scmp.eq.s32.totalorder %s20, 0
      %p115 = por %p113, %p114
      %s117 = sadd.s32 %s116, 1
      %p120 = scmp.eq.s32.totalorder %s14, 2
      %p121 = scmp.ne.s32.totalorder %s116, %s118
      %p122 = scmp.eq.s32.totalorder %s14, 0
      %p123 = por %p121, %p122
      %p124 = scmp.ne.s32.totalorder %s116, %s118
      %p125 = scmp.eq.s32.totalorder %s19, 2
      %p126 = por %p124, %p125
      %p127 = scmp.ne.s32.totalorder %s118, %s119
      %p128 = scmp.eq.s32.totalorder %s19, 0
      %p129 = por %p127, %p128
      %p130 = scmp.ne.s32.totalorder %s118, %s119
      %p131 = scmp.eq.s32.totalorder %s20, 2
      %p132 = por %p130, %p131
      %p134 = scmp.ne.s32.totalorder %s119, %s133
      %p135 = scmp.eq.s32.totalorder %s20, 0
      %p136 = por %p134, %p135
      %s137 = ssub.s32 %s14, %s21
      %p138 = scmp.eq.s32.totalorder %s137, 0
      %s140 = sadd.s32 %s139, 1
      %s141 = scalar_select %p138, %s139, %s140
      %p144 = pneg %p138
      %p145 = scmp.eq.s32.totalorder %s14, 2
      %p146 = por %p144, %p145
      %p147 = scmp.ne.s32.totalorder %s139, %s142
      %p148 = scmp.eq.s32.totalorder %s14, 0
      %p149 = por %p147, %p148
      %p150 = scmp.ne.s32.totalorder %s139, %s142
      %p151 = scmp.eq.s32.totalorder %s19, 2
      %p152 = por %p150, %p151
      %p153 = scmp.ne.s32.totalorder %s142, %s143
      %p154 = scmp.eq.s32.totalorder %s19, 0
      %p155 = por %p153, %p154
      %p156 = scmp.ne.s32.totalorder %s142, %s143
      %p157 = scmp.eq.s32.totalorder %s20, 2
      %p158 = por %p156, %p157
      %p160 = scmp.ne.s32.totalorder %s143, %s159
      %p161 = scmp.eq.s32.totalorder %s20, 0
      %p162 = por %p160, %p161
      %p163 = scmp.le.s32.totalorder 1, %s14
      %p164 = scmp.lt.s32.totalorder %s14, 4
      %p165 = pnand %p163, %p164
      %p166 = pneg %p165
      // Predicated region
      $region9: #{tpu_custom_call.1} parent=5 // pred_check
        _
      $region10: #{tpu_custom_call.1} parent=5 // pred_check_branch
        %168 = sbr.rel (%p165) target = $region12
      $region11: #{tpu_custom_call.1} parent=5 // pred_region
        %s169 = ssub.s32 %s14, 1
        // Predicated region
        $region13: #{tpu_custom_call.1} parent=11 // pred_check
          %p170 = pneg %p61
        $region14: #{tpu_custom_call.1} parent=11 // pred_check_branch
          %172 = sbr.rel (%p170) target = $region16
        $region15: #{tpu_custom_call.1} parent=11 // pred_region
          _
        $region16: #{tpu_custom_call.1} parent=11 // pred_fallthru
          _
        // Predicated region
        $region17: #{tpu_custom_call.1} parent=11 // pred_check
          %p173 = pneg %p108
        $region18: #{tpu_custom_call.1} parent=11 // pred_check_branch
          %175 = sbr.rel (%p173) target = $region20
        $region19: #{tpu_custom_call.1} parent=11 // pred_region
          _
        $region20: #{tpu_custom_call.1} parent=11 // pred_fallthru
          _
        // Predicated region
        $region21: #{tpu_custom_call.1} parent=11 // pred_check
          %p176 = pneg %p129
        $region22: #{tpu_custom_call.1} parent=11 // pred_check_branch
          %178 = sbr.rel (%p176) target = $region24
        $region23: #{tpu_custom_call.1} parent=11 // pred_region
          _
        $region24: #{tpu_custom_call.1} parent=11 // pred_fallthru
          _
      $region12: #{tpu_custom_call.1} parent=5 // pred_fallthru
        _
      %p179 = scmp.lt.s32.totalorder %s14, 3
      // Predicated region
      $region25: #{tpu_custom_call.1} parent=5 // pred_check
        %p180 = pneg %p179
      $region26: #{tpu_custom_call.1} parent=5 // pred_check_branch
        %182 = sbr.rel (%p180) target = $region28
      $region27: #{tpu_custom_call.1} parent=5 // pred_region
        // Predicated region
        $region29: #{tpu_custom_call.1} parent=27 // pred_check
          %p183 = pneg %p34
        $region30: #{tpu_custom_call.1} parent=27 // pred_check_branch
          %185 = sbr.rel (%p183) target = $region32
        $region31: #{tpu_custom_call.1} parent=27 // pred_region
          %s186 = smul.u32 32, %s14
          %p187 = scmp.lt.s32.totalorder %s186, 95
          %s188 = scalar_select %p187, %s186, 95
          %s189 = smul.addr %s188, 8
          %s190 = scalar_lea.vmem %s0, %s189
          %s191 = smul.u32 32, %s14
        $region32: #{tpu_custom_call.1} parent=27 // pred_fallthru
          _
        // Predicated region
        $region33: #{tpu_custom_call.1} parent=27 // pred_check
          %p192 = pneg %p81
        $region34: #{tpu_custom_call.1} parent=27 // pred_check_branch
          %194 = sbr.rel (%p192) target = $region36
        $region35: #{tpu_custom_call.1} parent=27 // pred_region
          %s195 = smul.u32 32, %s14
          %p196 = scmp.lt.s32.totalorder %s195, 95
          %s197 = scalar_select %p196, %s195, 95
          %s198 = smul.addr %s197, 4
          %s199 = scalar_lea.vmem %s2, %s198
          %s200 = smul.u32 32, %s14
        $region36: #{tpu_custom_call.1} parent=27 // pred_fallthru
          _
      $region28: #{tpu_custom_call.1} parent=5 // pred_fallthru
        _
      %p201 = scmp.le.s32.totalorder 1, %s14
      %p202 = scmp.lt.s32.totalorder %s14, 4
      %p203 = pnand %p201, %p202
      %p204 = pneg %p203
      // Predicated region
      $region37: #{tpu_custom_call.1} parent=5 // pred_check
        _
      $region38: #{tpu_custom_call.1} parent=5 // pred_check_branch
        %206 = sbr.rel (%p203) target = $region40
      $region39: #{tpu_custom_call.1} parent=5 // pred_region
        %s207 = ssub.s32 %s14, 1
        %s208 = smul.u32 32, %s19
        %p209 = scmp.lt.s32.totalorder %s208, 95
        %s210 = scalar_select %p209, %s208, 95
        %s211 = smul.addr %s210, 8
        %s212 = scalar_lea.vmem %s0, %s211
        %p213 = pneg %p40
        %p214 = pneg %p37
        %p215 = pneg %p61
        %p216 = pneg %p58
        %s217 = smul.u32 32, %s19
        %p218 = scmp.lt.s32.totalorder %s217, 95
        %s219 = scalar_select %p218, %s217, 95
        %s220 = smul.addr %s219, 4
        %s221 = scalar_lea.vmem %s2, %s220
        %p222 = pneg %p87
        %p223 = pneg %p84
        %p224 = pneg %p108
        %p225 = pneg %p105
        %p226 = pneg %p129
        %p227 = pneg %p126
        %p228 = pneg %p155
        %p229 = pneg %p152
        %s230 = sand.u32 %s142, 1
        %s231 = scalar_lea.sflag [#allocation3], %s230
        %s232 = sand.u32 %s142, 1
        %s233 = smul.addr %s232, 128
        %s234 = scalar_lea.vmem [#allocation2], %s233
        %s235 = smul.u32 32, %s19
        %p236 = scmp.lt.s32.totalorder %s235, 95
        %s237 = scalar_select %p236, %s235, 95
        %s238 = smul.addr %s237, 8
        %s239 = scalar_lea.vmem %s0, %s238
        %s240 = smul.u32 32, %s19
        %s241 = smul.u32 32, %s19
        %p242 = scmp.lt.s32.totalorder %s241, 95
        %s243 = scalar_select %p242, %s241, 95
        %s244 = smul.addr %s243, 4
        %s245 = scalar_lea.vmem %s2, %s244
        %s246 = smul.u32 32, %s19
        %s247 = smul.u32 32, %s19
        %v248 = vlaneseq
        %v249 = vand.u32 %v248, 127
        %v250 = vadd.s32 %v249, 128
        %v251 = vld [vmem:[%s239] sm:$0xff]
        %v252 = vld [vmem:[%s239 + $0x8] sm:$0xff]
        %v253 = vld [vmem:[%s239 + $0x10] sm:$0xff]
        %v254 = vld [vmem:[%s239 + $0x18] sm:$0xff]
        %v255 = vld [vmem:[%s239 + $0x20] sm:$0xff]
        %v256 = vld [vmem:[%s239 + $0x28] sm:$0xff]
        %v257 = vld [vmem:[%s239 + $0x30] sm:$0xff]
        %v258 = vld [vmem:[%s239 + $0x38] sm:$0xff]
        %v259 = vld [vmem:[%s239 + $0x40] sm:$0xff]
        %v260 = vld [vmem:[%s239 + $0x48] sm:$0xff]
        %v261 = vld [vmem:[%s239 + $0x50] sm:$0xff]
        %v262 = vld [vmem:[%s239 + $0x58] sm:$0xff]
        %v263 = vld [vmem:[%s239 + $0x60] sm:$0xff]
        %v264 = vld [vmem:[%s239 + $0x68] sm:$0xff]
        %v265 = vld [vmem:[%s239 + $0x70] sm:$0xff]
        %v266 = vld [vmem:[%s239 + $0x78] sm:$0xff]
        %v267 = vld [vmem:[%s239 + $0x80] sm:$0xff]
        %v268 = vld [vmem:[%s239 + $0x88] sm:$0xff]
        %v269 = vld [vmem:[%s239 + $0x90] sm:$0xff]
        %v270 = vld [vmem:[%s239 + $0x98] sm:$0xff]
        %v271 = vld [vmem:[%s239 + $0xa0] sm:$0xff]
        %v272 = vld [vmem:[%s239 + $0xa8] sm:$0xff]
        %v273 = vld [vmem:[%s239 + $0xb0] sm:$0xff]
        %v274 = vld [vmem:[%s239 + $0xb8] sm:$0xff]
        %v275 = vld [vmem:[%s239 + $0xc0] sm:$0xff]
        %v276 = vld [vmem:[%s239 + $0xc8] sm:$0xff]
        %v277 = vld [vmem:[%s239 + $0xd0] sm:$0xff]
        %v278 = vld [vmem:[%s239 + $0xd8] sm:$0xff]
        %v279 = vld [vmem:[%s239 + $0xe0] sm:$0xff]
        %v280 = vld [vmem:[%s239 + $0xe8] sm:$0xff]
        %v281 = vld [vmem:[%s239 + $0xf0] sm:$0xff]
        %v282 = vld [vmem:[%s239 + $0xf8] sm:$0xff]
        %283 = vset.pattern.permute.xlu0 0
        %284 = vperm.xlu0 %283, %v251
        %v285 = vpop.permute.xlu0 %284
        %286 = vset.pattern.permute.xlu0 0
        %287 = vperm.xlu0 %286, %v252
        %v288 = vpop.permute.xlu0 %287
        %289 = vset.pattern.permute.xlu0 0
        %290 = vperm.xlu0 %289, %v253
        %v291 = vpop.permute.xlu0 %290
        %292 = vset.pattern.permute.xlu0 0
        %293 = vperm.xlu0 %292, %v254
        %v294 = vpop.permute.xlu0 %293
        %295 = vset.pattern.permute.xlu0 0
        %296 = vperm.xlu0 %295, %v255
        %v297 = vpop.permute.xlu0 %296
        %298 = vset.pattern.permute.xlu0 0
        %299 = vperm.xlu0 %298, %v256
        %v300 = vpop.permute.xlu0 %299
        %301 = vset.pattern.permute.xlu0 0
        %302 = vperm.xlu0 %301, %v257
        %v303 = vpop.permute.xlu0 %302
        %304 = vset.pattern.permute.xlu0 0
        %305 = vperm.xlu0 %304, %v258
        %v306 = vpop.permute.xlu0 %305
        %307 = vset.pattern.permute.xlu0 0
        %308 = vperm.xlu0 %307, %v259
        %v309 = vpop.permute.xlu0 %308
        %310 = vset.pattern.permute.xlu0 0
        %311 = vperm.xlu0 %310, %v260
        %v312 = vpop.permute.xlu0 %311
        %313 = vset.pattern.permute.xlu0 0
        %314 = vperm.xlu0 %313, %v261
        %v315 = vpop.permute.xlu0 %314
        %316 = vset.pattern.permute.xlu0 0
        %317 = vperm.xlu0 %316, %v262
        %v318 = vpop.permute.xlu0 %317
        %319 = vset.pattern.permute.xlu0 0
        %320 = vperm.xlu0 %319, %v263
        %v321 = vpop.permute.xlu0 %320
        %322 = vset.pattern.permute.xlu0 0
        %323 = vperm.xlu0 %322, %v264
        %v324 = vpop.permute.xlu0 %323
        %325 = vset.pattern.permute.xlu0 0
        %326 = vperm.xlu0 %325, %v265
        %v327 = vpop.permute.xlu0 %326
        %328 = vset.pattern.permute.xlu0 0
        %329 = vperm.xlu0 %328, %v266
        %v330 = vpop.permute.xlu0 %329
        %331 = vset.pattern.permute.xlu0 0
        %332 = vperm.xlu0 %331, %v267
        %v333 = vpop.permute.xlu0 %332
        %334 = vset.pattern.permute.xlu0 0
        %335 = vperm.xlu0 %334, %v268
        %v336 = vpop.permute.xlu0 %335
        %337 = vset.pattern.permute.xlu0 0
        %338 = vperm.xlu0 %337, %v269
        %v339 = vpop.permute.xlu0 %338
        %340 = vset.pattern.permute.xlu0 0
        %341 = vperm.xlu0 %340, %v270
        %v342 = vpop.permute.xlu0 %341
        %343 = vset.pattern.permute.xlu0 0
        %344 = vperm.xlu0 %343, %v271
        %v345 = vpop.permute.xlu0 %344
        %346 = vset.pattern.permute.xlu0 0
        %347 = vperm.xlu0 %346, %v272
        %v348 = vpop.permute.xlu0 %347
        %349 = vset.pattern.permute.xlu0 0
        %350 = vperm.xlu0 %349, %v273
        %v351 = vpop.permute.xlu0 %350
        %352 = vset.pattern.permute.xlu0 0
        %353 = vperm.xlu0 %352, %v274
        %v354 = vpop.permute.xlu0 %353
        %355 = vset.pattern.permute.xlu0 0
        %356 = vperm.xlu0 %355, %v275
        %v357 = vpop.permute.xlu0 %356
        %358 = vset.pattern.permute.xlu0 0
        %359 = vperm.xlu0 %358, %v276
        %v360 = vpop.permute.xlu0 %359
        %361 = vset.pattern.permute.xlu0 0
        %362 = vperm.xlu0 %361, %v277
        %v363 = vpop.permute.xlu0 %362
        %364 = vset.pattern.permute.xlu0 0
        %365 = vperm.xlu0 %364, %v278
        %v366 = vpop.permute.xlu0 %365
        %367 = vset.pattern.permute.xlu0 0
        %368 = vperm.xlu0 %367, %v279
        %v369 = vpop.permute.xlu0 %368
        %370 = vset.pattern.permute.xlu0 0
        %371 = vperm.xlu0 %370, %v280
        %v372 = vpop.permute.xlu0 %371
        %373 = vset.pattern.permute.xlu0 0
        %374 = vperm.xlu0 %373, %v281
        %v375 = vpop.permute.xlu0 %374
        %376 = vset.pattern.permute.xlu0 0
        %377 = vperm.xlu0 %376, %v282
        %v378 = vpop.permute.xlu0 %377
        %vm379 = vcmp.eq.s32.totalorder %v249, %v285
        %vm380 = vcmp.eq.s32.totalorder %v250, %v285
        %vm381 = vcmp.eq.s32.totalorder %v249, %v288
        %vm382 = vcmp.eq.s32.totalorder %v250, %v288
        %vm383 = vcmp.eq.s32.totalorder %v249, %v291
        %vm384 = vcmp.eq.s32.totalorder %v250, %v291
        %vm385 = vcmp.eq.s32.totalorder %v249, %v294
        %vm386 = vcmp.eq.s32.totalorder %v250, %v294
        %vm387 = vcmp.eq.s32.totalorder %v249, %v297
        %vm388 = vcmp.eq.s32.totalorder %v250, %v297
        %vm389 = vcmp.eq.s32.totalorder %v249, %v300
        %vm390 = vcmp.eq.s32.totalorder %v250, %v300
        %vm391 = vcmp.eq.s32.totalorder %v249, %v303
        %vm392 = vcmp.eq.s32.totalorder %v250, %v303
        %vm393 = vcmp.eq.s32.totalorder %v249, %v306
        %vm394 = vcmp.eq.s32.totalorder %v250, %v306
        %vm395 = vcmp.eq.s32.totalorder %v249, %v309
        %vm396 = vcmp.eq.s32.totalorder %v250, %v309
        %vm397 = vcmp.eq.s32.totalorder %v249, %v312
        %vm398 = vcmp.eq.s32.totalorder %v250, %v312
        %vm399 = vcmp.eq.s32.totalorder %v249, %v315
        %vm400 = vcmp.eq.s32.totalorder %v250, %v315
        %vm401 = vcmp.eq.s32.totalorder %v249, %v318
        %vm402 = vcmp.eq.s32.totalorder %v250, %v318
        %vm403 = vcmp.eq.s32.totalorder %v249, %v321
        %vm404 = vcmp.eq.s32.totalorder %v250, %v321
        %vm405 = vcmp.eq.s32.totalorder %v249, %v324
        %vm406 = vcmp.eq.s32.totalorder %v250, %v324
        %vm407 = vcmp.eq.s32.totalorder %v249, %v327
        %vm408 = vcmp.eq.s32.totalorder %v250, %v327
        %vm409 = vcmp.eq.s32.totalorder %v249, %v330
        %vm410 = vcmp.eq.s32.totalorder %v250, %v330
        %vm411 = vcmp.eq.s32.totalorder %v249, %v333
        %vm412 = vcmp.eq.s32.totalorder %v250, %v333
        %vm413 = vcmp.eq.s32.totalorder %v249, %v336
        %vm414 = vcmp.eq.s32.totalorder %v250, %v336
        %vm415 = vcmp.eq.s32.totalorder %v249, %v339
        %vm416 = vcmp.eq.s32.totalorder %v250, %v339
        %vm417 = vcmp.eq.s32.totalorder %v249, %v342
        %vm418 = vcmp.eq.s32.totalorder %v250, %v342
        %vm419 = vcmp.eq.s32.totalorder %v249, %v345
        %vm420 = vcmp.eq.s32.totalorder %v250, %v345
        %vm421 = vcmp.eq.s32.totalorder %v249, %v348
        %vm422 = vcmp.eq.s32.totalorder %v250, %v348
        %vm423 = vcmp.eq.s32.totalorder %v249, %v351
        %vm424 = vcmp.eq.s32.totalorder %v250, %v351
        %vm425 = vcmp.eq.s32.totalorder %v249, %v354
        %vm426 = vcmp.eq.s32.totalorder %v250, %v354
        %vm427 = vcmp.eq.s32.totalorder %v249, %v357
        %vm428 = vcmp.eq.s32.totalorder %v250, %v357
        %vm429 = vcmp.eq.s32.totalorder %v249, %v360
        %vm430 = vcmp.eq.s32.totalorder %v250, %v360
        %vm431 = vcmp.eq.s32.totalorder %v249, %v363
        %vm432 = vcmp.eq.s32.totalorder %v250, %v363
        %vm433 = vcmp.eq.s32.totalorder %v249, %v366
        %vm434 = vcmp.eq.s32.totalorder %v250, %v366
        %vm435 = vcmp.eq.s32.totalorder %v249, %v369
        %vm436 = vcmp.eq.s32.totalorder %v250, %v369
        %vm437 = vcmp.eq.s32.totalorder %v249, %v372
        %vm438 = vcmp.eq.s32.totalorder %v250, %v372
        %vm439 = vcmp.eq.s32.totalorder %v249, %v375
        %vm440 = vcmp.eq.s32.totalorder %v250, %v375
        %vm441 = vcmp.eq.s32.totalorder %v249, %v378
        %vm442 = vcmp.eq.s32.totalorder %v250, %v378
        %v443 = vsel %vm379, 1.0, 0.0
        %v444 = vsel %vm380, 1.0, 0.0
        %v445 = vsel %vm381, 1.0, 0.0
        %v446 = vsel %vm382, 1.0, 0.0
        %v447 = vsel %vm383, 1.0, 0.0
        %v448 = vsel %vm384, 1.0, 0.0
        %v449 = vsel %vm385, 1.0, 0.0
        %v450 = vsel %vm386, 1.0, 0.0
        %v451 = vsel %vm387, 1.0, 0.0
        %v452 = vsel %vm388, 1.0, 0.0
        %v453 = vsel %vm389, 1.0, 0.0
        %v454 = vsel %vm390, 1.0, 0.0
        %v455 = vsel %vm391, 1.0, 0.0
        %v456 = vsel %vm392, 1.0, 0.0
        %v457 = vsel %vm393, 1.0, 0.0
        %v458 = vsel %vm394, 1.0, 0.0
        %v459 = vsel %vm395, 1.0, 0.0
        %v460 = vsel %vm396, 1.0, 0.0
        %v461 = vsel %vm397, 1.0, 0.0
        %v462 = vsel %vm398, 1.0, 0.0
        %v463 = vsel %vm399, 1.0, 0.0
        %v464 = vsel %vm400, 1.0, 0.0
        %v465 = vsel %vm401, 1.0, 0.0
        %v466 = vsel %vm402, 1.0, 0.0
        %v467 = vsel %vm403, 1.0, 0.0
        %v468 = vsel %vm404, 1.0, 0.0
        %v469 = vsel %vm405, 1.0, 0.0
        %v470 = vsel %vm406, 1.0, 0.0
        %v471 = vsel %vm407, 1.0, 0.0
        %v472 = vsel %vm408, 1.0, 0.0
        %v473 = vsel %vm409, 1.0, 0.0
        %v474 = vsel %vm410, 1.0, 0.0
        %v475 = vsel %vm411, 1.0, 0.0
        %v476 = vsel %vm412, 1.0, 0.0
        %v477 = vsel %vm413, 1.0, 0.0
        %v478 = vsel %vm414, 1.0, 0.0
        %v479 = vsel %vm415, 1.0, 0.0
        %v480 = vsel %vm416, 1.0, 0.0
        %v481 = vsel %vm417, 1.0, 0.0
        %v482 = vsel %vm418, 1.0, 0.0
        %v483 = vsel %vm419, 1.0, 0.0
        %v484 = vsel %vm420, 1.0, 0.0
        %v485 = vsel %vm421, 1.0, 0.0
        %v486 = vsel %vm422, 1.0, 0.0
        %v487 = vsel %vm423, 1.0, 0.0
        %v488 = vsel %vm424, 1.0, 0.0
        %v489 = vsel %vm425, 1.0, 0.0
        %v490 = vsel %vm426, 1.0, 0.0
        %v491 = vsel %vm427, 1.0, 0.0
        %v492 = vsel %vm428, 1.0, 0.0
        %v493 = vsel %vm429, 1.0, 0.0
        %v494 = vsel %vm430, 1.0, 0.0
        %v495 = vsel %vm431, 1.0, 0.0
        %v496 = vsel %vm432, 1.0, 0.0
        %v497 = vsel %vm433, 1.0, 0.0
        %v498 = vsel %vm434, 1.0, 0.0
        %v499 = vsel %vm435, 1.0, 0.0
        %v500 = vsel %vm436, 1.0, 0.0
        %v501 = vsel %vm437, 1.0, 0.0
        %v502 = vsel %vm438, 1.0, 0.0
        %v503 = vsel %vm439, 1.0, 0.0
        %v504 = vsel %vm440, 1.0, 0.0
        %v505 = vsel %vm441, 1.0, 0.0
        %v506 = vsel %vm442, 1.0, 0.0
        %v507 = vpack.c.bf16 %v445, %v443
        %v508 = vpack.c.bf16 %v446, %v444
        %v509 = vpack.c.bf16 %v449, %v447
        %v510 = vpack.c.bf16 %v450, %v448
        %v511 = vpack.c.bf16 %v453, %v451
        %v512 = vpack.c.bf16 %v454, %v452
        %v513 = vpack.c.bf16 %v457, %v455
        %v514 = vpack.c.bf16 %v458, %v456
        %v515 = vpack.c.bf16 %v461, %v459
        %v516 = vpack.c.bf16 %v462, %v460
        %v517 = vpack.c.bf16 %v465, %v463
        %v518 = vpack.c.bf16 %v466, %v464
        %v519 = vpack.c.bf16 %v469, %v467
        %v520 = vpack.c.bf16 %v470, %v468
        %v521 = vpack.c.bf16 %v473, %v471
        %v522 = vpack.c.bf16 %v474, %v472
        %v523 = vpack.c.bf16 %v477, %v475
        %v524 = vpack.c.bf16 %v478, %v476
        %v525 = vpack.c.bf16 %v481, %v479
        %v526 = vpack.c.bf16 %v482, %v480
        %v527 = vpack.c.bf16 %v485, %v483
        %v528 = vpack.c.bf16 %v486, %v484
        %v529 = vpack.c.bf16 %v489, %v487
        %v530 = vpack.c.bf16 %v490, %v488
        %v531 = vpack.c.bf16 %v493, %v491
        %v532 = vpack.c.bf16 %v494, %v492
        %v533 = vpack.c.bf16 %v497, %v495
        %v534 = vpack.c.bf16 %v498, %v496
        %v535 = vpack.c.bf16 %v501, %v499
        %v536 = vpack.c.bf16 %v502, %v500
        %v537 = vpack.c.bf16 %v505, %v503
        %v538 = vpack.c.bf16 %v506, %v504
        %v539 = vld [vmem:[%s1] sm:$0xf]
        %v540 = vld [vmem:[%s1 + $0x4] sm:$0xf]
        %v541 = vld [vmem:[%s1 + $0x8] sm:$0xf]
        %v542 = vld [vmem:[%s1 + $0xc] sm:$0xf]
        %v543 = vld [vmem:[%s1 + $0x10] sm:$0xf]
        %v544 = vld [vmem:[%s1 + $0x14] sm:$0xf]
        %v545 = vld [vmem:[%s1 + $0x18] sm:$0xf]
        %v546 = vld [vmem:[%s1 + $0x1c] sm:$0xf]
        %v547 = vld [vmem:[%s1 + $0x20] sm:$0xf]
        %v548 = vld [vmem:[%s1 + $0x24] sm:$0xf]
        %v549 = vld [vmem:[%s1 + $0x28] sm:$0xf]
        %v550 = vld [vmem:[%s1 + $0x2c] sm:$0xf]
        %v551 = vld [vmem:[%s1 + $0x30] sm:$0xf]
        %v552 = vld [vmem:[%s1 + $0x34] sm:$0xf]
        %v553 = vld [vmem:[%s1 + $0x38] sm:$0xf]
        %v554 = vld [vmem:[%s1 + $0x3c] sm:$0xf]
        %v555 = vld [vmem:[%s1 + $0x40] sm:$0xf]
        %v556 = vld [vmem:[%s1 + $0x44] sm:$0xf]
        %v557 = vld [vmem:[%s1 + $0x48] sm:$0xf]
        %v558 = vld [vmem:[%s1 + $0x4c] sm:$0xf]
        %v559 = vld [vmem:[%s1 + $0x50] sm:$0xf]
        %v560 = vld [vmem:[%s1 + $0x54] sm:$0xf]
        %v561 = vld [vmem:[%s1 + $0x58] sm:$0xf]
        %v562 = vld [vmem:[%s1 + $0x5c] sm:$0xf]
        %v563 = vld [vmem:[%s1 + $0x60] sm:$0xf]
        %v564 = vld [vmem:[%s1 + $0x64] sm:$0xf]
        %v565 = vld [vmem:[%s1 + $0x68] sm:$0xf]
        %v566 = vld [vmem:[%s1 + $0x6c] sm:$0xf]
        %v567 = vld [vmem:[%s1 + $0x70] sm:$0xf]
        %v568 = vld [vmem:[%s1 + $0x74] sm:$0xf]
        %v569 = vld [vmem:[%s1 + $0x78] sm:$0xf]
        %v570 = vld [vmem:[%s1 + $0x7c] sm:$0xf]
        %v571 = vld [vmem:[%s245] sm:$0xf]
        %v572 = vld [vmem:[%s245 + $0x4] sm:$0xf]
        %v573 = vld [vmem:[%s245 + $0x8] sm:$0xf]
        %v574 = vld [vmem:[%s245 + $0xc] sm:$0xf]
        %v575 = vld [vmem:[%s245 + $0x10] sm:$0xf]
        %v576 = vld [vmem:[%s245 + $0x14] sm:$0xf]
        %v577 = vld [vmem:[%s245 + $0x18] sm:$0xf]
        %v578 = vld [vmem:[%s245 + $0x1c] sm:$0xf]
        %v579 = vld [vmem:[%s245 + $0x20] sm:$0xf]
        %v580 = vld [vmem:[%s245 + $0x24] sm:$0xf]
        %v581 = vld [vmem:[%s245 + $0x28] sm:$0xf]
        %v582 = vld [vmem:[%s245 + $0x2c] sm:$0xf]
        %v583 = vld [vmem:[%s245 + $0x30] sm:$0xf]
        %v584 = vld [vmem:[%s245 + $0x34] sm:$0xf]
        %v585 = vld [vmem:[%s245 + $0x38] sm:$0xf]
        %v586 = vld [vmem:[%s245 + $0x3c] sm:$0xf]
        %v587 = vld [vmem:[%s245 + $0x40] sm:$0xf]
        %v588 = vld [vmem:[%s245 + $0x44] sm:$0xf]
        %v589 = vld [vmem:[%s245 + $0x48] sm:$0xf]
        %v590 = vld [vmem:[%s245 + $0x4c] sm:$0xf]
        %v591 = vld [vmem:[%s245 + $0x50] sm:$0xf]
        %v592 = vld [vmem:[%s245 + $0x54] sm:$0xf]
        %v593 = vld [vmem:[%s245 + $0x58] sm:$0xf]
        %v594 = vld [vmem:[%s245 + $0x5c] sm:$0xf]
        %v595 = vld [vmem:[%s245 + $0x60] sm:$0xf]
        %v596 = vld [vmem:[%s245 + $0x64] sm:$0xf]
        %v597 = vld [vmem:[%s245 + $0x68] sm:$0xf]
        %v598 = vld [vmem:[%s245 + $0x6c] sm:$0xf]
        %v599 = vld [vmem:[%s245 + $0x70] sm:$0xf]
        %v600 = vld [vmem:[%s245 + $0x74] sm:$0xf]
        %v601 = vld [vmem:[%s245 + $0x78] sm:$0xf]
        %v602 = vld [vmem:[%s245 + $0x7c] sm:$0xf]
        %v603 = vld [vmem:[%s3] sm:$0xf]
        %v604 = vld [vmem:[%s3 + $0x4] sm:$0xf]
        %v605 = vld [vmem:[%s3 + $0x8] sm:$0xf]
        %v606 = vld [vmem:[%s3 + $0xc] sm:$0xf]
        %v607 = vld [vmem:[%s3 + $0x10] sm:$0xf]
        %v608 = vld [vmem:[%s3 + $0x14] sm:$0xf]
        %v609 = vld [vmem:[%s3 + $0x18] sm:$0xf]
        %v610 = vld [vmem:[%s3 + $0x1c] sm:$0xf]
        %v611 = vld [vmem:[%s3 + $0x20] sm:$0xf]
        %v612 = vld [vmem:[%s3 + $0x24] sm:$0xf]
        %v613 = vld [vmem:[%s3 + $0x28] sm:$0xf]
        %v614 = vld [vmem:[%s3 + $0x2c] sm:$0xf]
        %v615 = vld [vmem:[%s3 + $0x30] sm:$0xf]
        %v616 = vld [vmem:[%s3 + $0x34] sm:$0xf]
        %v617 = vld [vmem:[%s3 + $0x38] sm:$0xf]
        %v618 = vld [vmem:[%s3 + $0x3c] sm:$0xf]
        %v619 = vld [vmem:[%s4] sm:$0x1]
        %v621 = vperm.slane %v619, 0
        %v655 = vunpack.c.l.b16 %v571
        %v656 = vunpack.c.l.b16 %v572
        %v657 = vunpack.c.l.b16 %v573
        %v658 = vunpack.c.l.b16 %v574
        %v659 = vunpack.c.l.b16 %v575
        %v660 = vunpack.c.l.b16 %v576
        %v661 = vunpack.c.l.b16 %v577
        %v662 = vunpack.c.l.b16 %v578
        %v663 = vunpack.c.l.b16 %v579
        %v664 = vunpack.c.l.b16 %v580
        %v665 = vunpack.c.l.b16 %v581
        %v666 = vunpack.c.l.b16 %v582
        %v667 = vunpack.c.l.b16 %v583
        %v668 = vunpack.c.l.b16 %v584
        %v669 = vunpack.c.l.b16 %v585
        %v670 = vunpack.c.l.b16 %v586
        %v671 = vunpack.c.l.b16 %v587
        %v672 = vunpack.c.l.b16 %v588
        %v673 = vunpack.c.l.b16 %v589
        %v674 = vunpack.c.l.b16 %v590
        %v675 = vunpack.c.l.b16 %v591
        %v676 = vunpack.c.l.b16 %v592
        %v677 = vunpack.c.l.b16 %v593
        %v678 = vunpack.c.l.b16 %v594
        %v679 = vunpack.c.l.b16 %v595
        %v680 = vunpack.c.l.b16 %v596
        %v681 = vunpack.c.l.b16 %v597
        %v682 = vunpack.c.l.b16 %v598
        %v683 = vunpack.c.l.b16 %v599
        %v684 = vunpack.c.l.b16 %v600
        %v685 = vunpack.c.l.b16 %v601
        %v686 = vunpack.c.l.b16 %v602
        %v687 = vpack.c.b16 %v656, %v655
        %v688 = vpack.c.b16 %v658, %v657
        %v689 = vpack.c.b16 %v660, %v659
        %v690 = vpack.c.b16 %v662, %v661
        %v691 = vpack.c.b16 %v664, %v663
        %v692 = vpack.c.b16 %v666, %v665
        %v693 = vpack.c.b16 %v668, %v667
        %v694 = vpack.c.b16 %v670, %v669
        %v695 = vpack.c.b16 %v672, %v671
        %v696 = vpack.c.b16 %v674, %v673
        %v697 = vpack.c.b16 %v676, %v675
        %v698 = vpack.c.b16 %v678, %v677
        %v699 = vpack.c.b16 %v680, %v679
        %v700 = vpack.c.b16 %v682, %v681
        %v701 = vpack.c.b16 %v684, %v683
        %v702 = vpack.c.b16 %v686, %v685
        %v735 = vunpack.c.l.b16 %v603
        %v736 = vunpack.c.l.b16 %v604
        %v737 = vunpack.c.l.b16 %v605
        %v738 = vunpack.c.l.b16 %v606
        %v739 = vunpack.c.l.b16 %v607
        %v740 = vunpack.c.l.b16 %v608
        %v741 = vunpack.c.l.b16 %v609
        %v742 = vunpack.c.l.b16 %v610
        %v743 = vunpack.c.l.b16 %v611
        %v744 = vunpack.c.l.b16 %v612
        %v745 = vunpack.c.l.b16 %v613
        %v746 = vunpack.c.l.b16 %v614
        %v747 = vunpack.c.l.b16 %v615
        %v748 = vunpack.c.l.b16 %v616
        %v749 = vunpack.c.l.b16 %v617
        %v750 = vunpack.c.l.b16 %v618
        %v751 = vpack.c.b16 %v736, %v735
        %v752 = vpack.c.b16 %v738, %v737
        %v753 = vpack.c.b16 %v740, %v739
        %v754 = vpack.c.b16 %v742, %v741
        %v755 = vpack.c.b16 %v744, %v743
        %v756 = vpack.c.b16 %v746, %v745
        %v757 = vpack.c.b16 %v748, %v747
        %v758 = vpack.c.b16 %v750, %v749
        %767 = vmatpush.bf16.msra.mxu0 %v758
        %768 = vmatpush.bf16.msra.mxu0 %v757
        %769 = vmatpush.bf16.msra.mxu0 %v756
        %770 = vmatpush.bf16.msra.mxu0 %v755
        %771 = vmatpush.bf16.msra.mxu0 %v754
        %772 = vmatpush.bf16.msra.mxu0 %v753
        %773 = vmatpush.bf16.msra.mxu0 %v752
        %774 = vmatpush.bf16.msra.mxu0 %v751
        %775 = vmatmul.bf16.gmra.mxu0 %v687
        %v776 = vpop.f32.mrf.mxu0
        %v777 = vadd.f32 %v621, %v776
        %v778 = vpop.f32.mrf.mxu0
        %v779 = vadd.f32 %v621, %v778
        %780 = vmatmul.bf16.gmra.mxu0 %v688
        %v781 = vpop.f32.mrf.mxu0
        %v782 = vadd.f32 %v621, %v781
        %v783 = vpop.f32.mrf.mxu0
        %v784 = vadd.f32 %v621, %v783
        %785 = vmatmul.bf16.gmra.mxu0 %v689
        %v786 = vpop.f32.mrf.mxu0
        %v787 = vadd.f32 %v621, %v786
        %v788 = vpop.f32.mrf.mxu0
        %v789 = vadd.f32 %v621, %v788
        %790 = vmatmul.bf16.gmra.mxu0 %v690
        %v791 = vpop.f32.mrf.mxu0
        %v792 = vadd.f32 %v621, %v791
        %v793 = vpop.f32.mrf.mxu0
        %v794 = vadd.f32 %v621, %v793
        %795 = vmatmul.bf16.gmra.mxu0 %v691
        %v796 = vpop.f32.mrf.mxu0
        %v797 = vadd.f32 %v621, %v796
        %v798 = vpop.f32.mrf.mxu0
        %v799 = vadd.f32 %v621, %v798
        %800 = vmatmul.bf16.gmra.mxu0 %v692
        %v801 = vpop.f32.mrf.mxu0
        %v802 = vadd.f32 %v621, %v801
        %v803 = vpop.f32.mrf.mxu0
        %v804 = vadd.f32 %v621, %v803
        %805 = vmatmul.bf16.gmra.mxu0 %v693
        %v806 = vpop.f32.mrf.mxu0
        %v807 = vadd.f32 %v621, %v806
        %v808 = vpop.f32.mrf.mxu0
        %v809 = vadd.f32 %v621, %v808
        %810 = vmatmul.bf16.gmra.mxu0 %v694
        %v811 = vpop.f32.mrf.mxu0
        %v812 = vadd.f32 %v621, %v811
        %v813 = vpop.f32.mrf.mxu0
        %v814 = vadd.f32 %v621, %v813
        %815 = vmatmul.bf16.gmra.mxu0 %v695
        %v816 = vpop.f32.mrf.mxu0
        %v817 = vadd.f32 %v621, %v816
        %v818 = vpop.f32.mrf.mxu0
        %v819 = vadd.f32 %v621, %v818
        %820 = vmatmul.bf16.gmra.mxu0 %v696
        %v821 = vpop.f32.mrf.mxu0
        %v822 = vadd.f32 %v621, %v821
        %v823 = vpop.f32.mrf.mxu0
        %v824 = vadd.f32 %v621, %v823
        %825 = vmatmul.bf16.gmra.mxu0 %v697
        %v826 = vpop.f32.mrf.mxu0
        %v827 = vadd.f32 %v621, %v826
        %v828 = vpop.f32.mrf.mxu0
        %v829 = vadd.f32 %v621, %v828
        %830 = vmatmul.bf16.gmra.mxu0 %v698
        %v831 = vpop.f32.mrf.mxu0
        %v832 = vadd.f32 %v621, %v831
        %v833 = vpop.f32.mrf.mxu0
        %v834 = vadd.f32 %v621, %v833
        %835 = vmatmul.bf16.gmra.mxu0 %v699
        %v836 = vpop.f32.mrf.mxu0
        %v837 = vadd.f32 %v621, %v836
        %v838 = vpop.f32.mrf.mxu0
        %v839 = vadd.f32 %v621, %v838
        %840 = vmatmul.bf16.gmra.mxu0 %v700
        %v841 = vpop.f32.mrf.mxu0
        %v842 = vadd.f32 %v621, %v841
        %v843 = vpop.f32.mrf.mxu0
        %v844 = vadd.f32 %v621, %v843
        %845 = vmatmul.bf16.gmra.mxu0 %v701
        %v846 = vpop.f32.mrf.mxu0
        %v847 = vadd.f32 %v621, %v846
        %v848 = vpop.f32.mrf.mxu0
        %v849 = vadd.f32 %v621, %v848
        %850 = vmatmul.bf16.gmra.mxu0 %v702
        %v851 = vpop.f32.mrf.mxu0
        %v852 = vadd.f32 %v621, %v851
        %v853 = vpop.f32.mrf.mxu0
        %v854 = vadd.f32 %v621, %v853
        %855 = vdwg.mxu0
        %v888 = vunpack.c.l.b16 %v539
        %v889 = vunpack.c.l.b16 %v540
        %v890 = vunpack.c.l.b16 %v541
        %v891 = vunpack.c.l.b16 %v542
        %v892 = vunpack.c.l.b16 %v543
        %v893 = vunpack.c.l.b16 %v544
        %v894 = vunpack.c.l.b16 %v545
        %v895 = vunpack.c.l.b16 %v546
        %v896 = vunpack.c.l.b16 %v547
        %v897 = vunpack.c.l.b16 %v548
        %v898 = vunpack.c.l.b16 %v549
        %v899 = vunpack.c.l.b16 %v550
        %v900 = vunpack.c.l.b16 %v551
        %v901 = vunpack.c.l.b16 %v552
        %v902 = vunpack.c.l.b16 %v553
        %v903 = vunpack.c.l.b16 %v554
        %v904 = vunpack.c.l.b16 %v555
        %v905 = vunpack.c.l.b16 %v556
        %v906 = vunpack.c.l.b16 %v557
        %v907 = vunpack.c.l.b16 %v558
        %v908 = vunpack.c.l.b16 %v559
        %v909 = vunpack.c.l.b16 %v560
        %v910 = vunpack.c.l.b16 %v561
        %v911 = vunpack.c.l.b16 %v562
        %v912 = vunpack.c.l.b16 %v563
        %v913 = vunpack.c.l.b16 %v564
        %v914 = vunpack.c.l.b16 %v565
        %v915 = vunpack.c.l.b16 %v566
        %v916 = vunpack.c.l.b16 %v567
        %v917 = vunpack.c.l.b16 %v568
        %v918 = vunpack.c.l.b16 %v569
        %v919 = vunpack.c.l.b16 %v570
        %v920 = vpack.c.b16 %v889, %v888
        %v921 = vpack.c.b16 %v891, %v890
        %v922 = vpack.c.b16 %v893, %v892
        %v923 = vpack.c.b16 %v895, %v894
        %v924 = vpack.c.b16 %v897, %v896
        %v925 = vpack.c.b16 %v899, %v898
        %v926 = vpack.c.b16 %v901, %v900
        %v927 = vpack.c.b16 %v903, %v902
        %v928 = vpack.c.b16 %v905, %v904
        %v929 = vpack.c.b16 %v907, %v906
        %v930 = vpack.c.b16 %v909, %v908
        %v931 = vpack.c.b16 %v911, %v910
        %v932 = vpack.c.b16 %v913, %v912
        %v933 = vpack.c.b16 %v915, %v914
        %v934 = vpack.c.b16 %v917, %v916
        %v935 = vpack.c.b16 %v919, %v918
        %952 = vmatpush.bf16.msra.mxu0 %v927
        %953 = vmatpush.bf16.msra.mxu0 %v926
        %954 = vmatpush.bf16.msra.mxu0 %v925
        %955 = vmatpush.bf16.msra.mxu0 %v924
        %956 = vmatpush.bf16.msra.mxu0 %v923
        %957 = vmatpush.bf16.msra.mxu0 %v922
        %958 = vmatpush.bf16.msra.mxu0 %v921
        %959 = vmatpush.bf16.msra.mxu0 %v920
        %960 = vmatmul.bf16.gmra.mxu0 %v507
        %v961 = vpop.f32.mrf.mxu0
        %v962 = vadd.f32 %v777, %v961
        %v963 = vpop.f32.mrf.mxu0
        %v964 = vadd.f32 %v779, %v963
        %965 = vmatmul.bf16.gmra.mxu0 %v509
        %v966 = vpop.f32.mrf.mxu0
        %v967 = vadd.f32 %v782, %v966
        %v968 = vpop.f32.mrf.mxu0
        %v969 = vadd.f32 %v784, %v968
        %970 = vmatmul.bf16.gmra.mxu0 %v511
        %v971 = vpop.f32.mrf.mxu0
        %v972 = vadd.f32 %v787, %v971
        %v973 = vpop.f32.mrf.mxu0
        %v974 = vadd.f32 %v789, %v973
        %975 = vmatmul.bf16.gmra.mxu0 %v513
        %v976 = vpop.f32.mrf.mxu0
        %v977 = vadd.f32 %v792, %v976
        %v978 = vpop.f32.mrf.mxu0
        %v979 = vadd.f32 %v794, %v978
        %980 = vmatmul.bf16.gmra.mxu0 %v515
        %v981 = vpop.f32.mrf.mxu0
        %v982 = vadd.f32 %v797, %v981
        %v983 = vpop.f32.mrf.mxu0
        %v984 = vadd.f32 %v799, %v983
        %985 = vmatmul.bf16.gmra.mxu0 %v517
        %v986 = vpop.f32.mrf.mxu0
        %v987 = vadd.f32 %v802, %v986
        %v988 = vpop.f32.mrf.mxu0
        %v989 = vadd.f32 %v804, %v988
        %990 = vmatmul.bf16.gmra.mxu0 %v519
        %v991 = vpop.f32.mrf.mxu0
        %v992 = vadd.f32 %v807, %v991
        %v993 = vpop.f32.mrf.mxu0
        %v994 = vadd.f32 %v809, %v993
        %995 = vmatmul.bf16.gmra.mxu0 %v521
        %v996 = vpop.f32.mrf.mxu0
        %v997 = vadd.f32 %v812, %v996
        %v998 = vpop.f32.mrf.mxu0
        %v999 = vadd.f32 %v814, %v998
        %1000 = vmatmul.bf16.gmra.mxu0 %v523
        %v1001 = vpop.f32.mrf.mxu0
        %v1002 = vadd.f32 %v817, %v1001
        %v1003 = vpop.f32.mrf.mxu0
        %v1004 = vadd.f32 %v819, %v1003
        %1005 = vmatmul.bf16.gmra.mxu0 %v525
        %v1006 = vpop.f32.mrf.mxu0
        %v1007 = vadd.f32 %v822, %v1006
        %v1008 = vpop.f32.mrf.mxu0
        %v1009 = vadd.f32 %v824, %v1008
        %1010 = vmatmul.bf16.gmra.mxu0 %v527
        %v1011 = vpop.f32.mrf.mxu0
        %v1012 = vadd.f32 %v827, %v1011
        %v1013 = vpop.f32.mrf.mxu0
        %v1014 = vadd.f32 %v829, %v1013
        %1015 = vmatmul.bf16.gmra.mxu0 %v529
        %v1016 = vpop.f32.mrf.mxu0
        %v1017 = vadd.f32 %v832, %v1016
        %v1018 = vpop.f32.mrf.mxu0
        %v1019 = vadd.f32 %v834, %v1018
        %1020 = vmatmul.bf16.gmra.mxu0 %v531
        %v1021 = vpop.f32.mrf.mxu0
        %v1022 = vadd.f32 %v837, %v1021
        %v1023 = vpop.f32.mrf.mxu0
        %v1024 = vadd.f32 %v839, %v1023
        %1025 = vmatmul.bf16.gmra.mxu0 %v533
        %v1026 = vpop.f32.mrf.mxu0
        %v1027 = vadd.f32 %v842, %v1026
        %v1028 = vpop.f32.mrf.mxu0
        %v1029 = vadd.f32 %v844, %v1028
        %1030 = vmatmul.bf16.gmra.mxu0 %v535
        %v1031 = vpop.f32.mrf.mxu0
        %v1032 = vadd.f32 %v847, %v1031
        %v1033 = vpop.f32.mrf.mxu0
        %v1034 = vadd.f32 %v849, %v1033
        %1035 = vmatmul.bf16.gmra.mxu0 %v537
        %v1036 = vpop.f32.mrf.mxu0
        %v1037 = vadd.f32 %v852, %v1036
        %v1038 = vpop.f32.mrf.mxu0
        %v1039 = vadd.f32 %v854, %v1038
        %1040 = vdwg.mxu0
        %1041 = vmatpush.bf16.msra.mxu0 %v935
        %1042 = vmatpush.bf16.msra.mxu0 %v934
        %1043 = vmatpush.bf16.msra.mxu0 %v933
        %1044 = vmatpush.bf16.msra.mxu0 %v932
        %1045 = vmatpush.bf16.msra.mxu0 %v931
        %1046 = vmatpush.bf16.msra.mxu0 %v930
        %1047 = vmatpush.bf16.msra.mxu0 %v929
        %1048 = vmatpush.bf16.msra.mxu0 %v928
        %1049 = vmatmul.bf16.gmra.mxu0 %v508
        %v1050 = vpop.f32.mrf.mxu0
        %v1051 = vadd.f32 %v962, %v1050
        %v1052 = vpop.f32.mrf.mxu0
        %v1053 = vadd.f32 %v964, %v1052
        %1054 = vmatmul.bf16.gmra.mxu0 %v510
        %v1055 = vpop.f32.mrf.mxu0
        %v1056 = vadd.f32 %v967, %v1055
        %v1057 = vpop.f32.mrf.mxu0
        %v1058 = vadd.f32 %v969, %v1057
        %1059 = vmatmul.bf16.gmra.mxu0 %v512
        %v1060 = vpop.f32.mrf.mxu0
        %v1061 = vadd.f32 %v972, %v1060
        %v1062 = vpop.f32.mrf.mxu0
        %v1063 = vadd.f32 %v974, %v1062
        %1064 = vmatmul.bf16.gmra.mxu0 %v514
        %v1065 = vpop.f32.mrf.mxu0
        %v1066 = vadd.f32 %v977, %v1065
        %v1067 = vpop.f32.mrf.mxu0
        %v1068 = vadd.f32 %v979, %v1067
        %1069 = vmatmul.bf16.gmra.mxu0 %v516
        %v1070 = vpop.f32.mrf.mxu0
        %v1071 = vadd.f32 %v982, %v1070
        %v1072 = vpop.f32.mrf.mxu0
        %v1073 = vadd.f32 %v984, %v1072
        %1074 = vmatmul.bf16.gmra.mxu0 %v518
        %v1075 = vpop.f32.mrf.mxu0
        %v1076 = vadd.f32 %v987, %v1075
        %v1077 = vpop.f32.mrf.mxu0
        %v1078 = vadd.f32 %v989, %v1077
        %1079 = vmatmul.bf16.gmra.mxu0 %v520
        %v1080 = vpop.f32.mrf.mxu0
        %v1081 = vadd.f32 %v992, %v1080
        %v1082 = vpop.f32.mrf.mxu0
        %v1083 = vadd.f32 %v994, %v1082
        %1084 = vmatmul.bf16.gmra.mxu0 %v522
        %v1085 = vpop.f32.mrf.mxu0
        %v1086 = vadd.f32 %v997, %v1085
        %v1087 = vpop.f32.mrf.mxu0
        %v1088 = vadd.f32 %v999, %v1087
        %1089 = vmatmul.bf16.gmra.mxu0 %v524
        %v1090 = vpop.f32.mrf.mxu0
        %v1091 = vadd.f32 %v1002, %v1090
        %v1092 = vpop.f32.mrf.mxu0
        %v1093 = vadd.f32 %v1004, %v1092
        %1094 = vmatmul.bf16.gmra.mxu0 %v526
        %v1095 = vpop.f32.mrf.mxu0
        %v1096 = vadd.f32 %v1007, %v1095
        %v1097 = vpop.f32.mrf.mxu0
        %v1098 = vadd.f32 %v1009, %v1097
        %1099 = vmatmul.bf16.gmra.mxu0 %v528
        %v1100 = vpop.f32.mrf.mxu0
        %v1101 = vadd.f32 %v1012, %v1100
        %v1102 = vpop.f32.mrf.mxu0
        %v1103 = vadd.f32 %v1014, %v1102
        %1104 = vmatmul.bf16.gmra.mxu0 %v530
        %v1105 = vpop.f32.mrf.mxu0
        %v1106 = vadd.f32 %v1017, %v1105
        %v1107 = vpop.f32.mrf.mxu0
        %v1108 = vadd.f32 %v1019, %v1107
        %1109 = vmatmul.bf16.gmra.mxu0 %v532
        %v1110 = vpop.f32.mrf.mxu0
        %v1111 = vadd.f32 %v1022, %v1110
        %v1112 = vpop.f32.mrf.mxu0
        %v1113 = vadd.f32 %v1024, %v1112
        %1114 = vmatmul.bf16.gmra.mxu0 %v534
        %v1115 = vpop.f32.mrf.mxu0
        %v1116 = vadd.f32 %v1027, %v1115
        %v1117 = vpop.f32.mrf.mxu0
        %v1118 = vadd.f32 %v1029, %v1117
        %1119 = vmatmul.bf16.gmra.mxu0 %v536
        %v1120 = vpop.f32.mrf.mxu0
        %v1121 = vadd.f32 %v1032, %v1120
        %v1122 = vpop.f32.mrf.mxu0
        %v1123 = vadd.f32 %v1034, %v1122
        %1124 = vmatmul.bf16.gmra.mxu0 %v538
        %v1125 = vpop.f32.mrf.mxu0
        %v1126 = vadd.f32 %v1037, %v1125
        %v1127 = vpop.f32.mrf.mxu0
        %v1128 = vadd.f32 %v1039, %v1127
        %1129 = vdwg.mxu0
        %v1130 = vmax.f32 %v1051, 0.0
        %v1131 = vmax.f32 %v1053, 0.0
        %v1132 = vmax.f32 %v1056, 0.0
        %v1133 = vmax.f32 %v1058, 0.0
        %v1134 = vmax.f32 %v1061, 0.0
        %v1135 = vmax.f32 %v1063, 0.0
        %v1136 = vmax.f32 %v1066, 0.0
        %v1137 = vmax.f32 %v1068, 0.0
        %v1138 = vmax.f32 %v1071, 0.0
        %v1139 = vmax.f32 %v1073, 0.0
        %v1140 = vmax.f32 %v1076, 0.0
        %v1141 = vmax.f32 %v1078, 0.0
        %v1142 = vmax.f32 %v1081, 0.0
        %v1143 = vmax.f32 %v1083, 0.0
        %v1144 = vmax.f32 %v1086, 0.0
        %v1145 = vmax.f32 %v1088, 0.0
        %v1146 = vmax.f32 %v1091, 0.0
        %v1147 = vmax.f32 %v1093, 0.0
        %v1148 = vmax.f32 %v1096, 0.0
        %v1149 = vmax.f32 %v1098, 0.0
        %v1150 = vmax.f32 %v1101, 0.0
        %v1151 = vmax.f32 %v1103, 0.0
        %v1152 = vmax.f32 %v1106, 0.0
        %v1153 = vmax.f32 %v1108, 0.0
        %v1154 = vmax.f32 %v1111, 0.0
        %v1155 = vmax.f32 %v1113, 0.0
        %v1156 = vmax.f32 %v1116, 0.0
        %v1157 = vmax.f32 %v1118, 0.0
        %v1158 = vmax.f32 %v1121, 0.0
        %v1159 = vmax.f32 %v1123, 0.0
        %v1160 = vmax.f32 %v1126, 0.0
        %v1161 = vmax.f32 %v1128, 0.0
        %v1162 = vpack.c.bf16 %v1130, %v1130
        %v1163 = vpack.c.bf16 %v1131, %v1131
        %v1164 = vpack.c.bf16 %v1132, %v1132
        %v1165 = vpack.c.bf16 %v1133, %v1133
        %v1166 = vpack.c.bf16 %v1134, %v1134
        %v1167 = vpack.c.bf16 %v1135, %v1135
        %v1168 = vpack.c.bf16 %v1136, %v1136
        %v1169 = vpack.c.bf16 %v1137, %v1137
        %v1170 = vpack.c.bf16 %v1138, %v1138
        %v1171 = vpack.c.bf16 %v1139, %v1139
        %v1172 = vpack.c.bf16 %v1140, %v1140
        %v1173 = vpack.c.bf16 %v1141, %v1141
        %v1174 = vpack.c.bf16 %v1142, %v1142
        %v1175 = vpack.c.bf16 %v1143, %v1143
        %v1176 = vpack.c.bf16 %v1144, %v1144
        %v1177 = vpack.c.bf16 %v1145, %v1145
        %v1178 = vpack.c.bf16 %v1146, %v1146
        %v1179 = vpack.c.bf16 %v1147, %v1147
        %v1180 = vpack.c.bf16 %v1148, %v1148
        %v1181 = vpack.c.bf16 %v1149, %v1149
        %v1182 = vpack.c.bf16 %v1150, %v1150
        %v1183 = vpack.c.bf16 %v1151, %v1151
        %v1184 = vpack.c.bf16 %v1152, %v1152
        %v1185 = vpack.c.bf16 %v1153, %v1153
        %v1186 = vpack.c.bf16 %v1154, %v1154
        %v1187 = vpack.c.bf16 %v1155, %v1155
        %v1188 = vpack.c.bf16 %v1156, %v1156
        %v1189 = vpack.c.bf16 %v1157, %v1157
        %v1190 = vpack.c.bf16 %v1158, %v1158
        %v1191 = vpack.c.bf16 %v1159, %v1159
        %v1192 = vpack.c.bf16 %v1160, %v1160
        %v1193 = vpack.c.bf16 %v1161, %v1161
        %1194 = vst [vmem:[%s234] sm:$0xf] %v1162
        %1195 = vst [vmem:[%s234 + $0x4] sm:$0xf] %v1163
        %1196 = vst [vmem:[%s234 + $0x8] sm:$0xf] %v1164
        %1197 = vst [vmem:[%s234 + $0xc] sm:$0xf] %v1165
        %1198 = vst [vmem:[%s234 + $0x10] sm:$0xf] %v1166
        %1199 = vst [vmem:[%s234 + $0x14] sm:$0xf] %v1167
        %1200 = vst [vmem:[%s234 + $0x18] sm:$0xf] %v1168
        %1201 = vst [vmem:[%s234 + $0x1c] sm:$0xf] %v1169
        %1202 = vst [vmem:[%s234 + $0x20] sm:$0xf] %v1170
        %1203 = vst [vmem:[%s234 + $0x24] sm:$0xf] %v1171
        %1204 = vst [vmem:[%s234 + $0x28] sm:$0xf] %v1172
        %1205 = vst [vmem:[%s234 + $0x2c] sm:$0xf] %v1173
        %1206 = vst [vmem:[%s234 + $0x30] sm:$0xf] %v1174
        %1207 = vst [vmem:[%s234 + $0x34] sm:$0xf] %v1175
        %1208 = vst [vmem:[%s234 + $0x38] sm:$0xf] %v1176
        %1209 = vst [vmem:[%s234 + $0x3c] sm:$0xf] %v1177
        %1210 = vst [vmem:[%s234 + $0x40] sm:$0xf] %v1178
        %1211 = vst [vmem:[%s234 + $0x44] sm:$0xf] %v1179
        %1212 = vst [vmem:[%s234 + $0x48] sm:$0xf] %v1180
        %1213 = vst [vmem:[%s234 + $0x4c] sm:$0xf] %v1181
        %1214 = vst [vmem:[%s234 + $0x50] sm:$0xf] %v1182
        %1215 = vst [vmem:[%s234 + $0x54] sm:$0xf] %v1183
        %1216 = vst [vmem:[%s234 + $0x58] sm:$0xf] %v1184
        %1217 = vst [vmem:[%s234 + $0x5c] sm:$0xf] %v1185
        %1218 = vst [vmem:[%s234 + $0x60] sm:$0xf] %v1186
        %1219 = vst [vmem:[%s234 + $0x64] sm:$0xf] %v1187
        %1220 = vst [vmem:[%s234 + $0x68] sm:$0xf] %v1188
        %1221 = vst [vmem:[%s234 + $0x6c] sm:$0xf] %v1189
        %1222 = vst [vmem:[%s234 + $0x70] sm:$0xf] %v1190
        %1223 = vst [vmem:[%s234 + $0x74] sm:$0xf] %v1191
        %1224 = vst [vmem:[%s234 + $0x78] sm:$0xf] %v1192
        %1225 = vst [vmem:[%s234 + $0x7c] sm:$0xf] %v1193
        %s1226 = sand.u32 %s142, 1
        %s1227 = scalar_lea.sflag [#allocation3], %s1226
        %s1228 = sand.u32 %s142, 1
        %s1229 = smul.addr %s1228, 128
        %s1230 = scalar_lea.vmem [#allocation2], %s1229
        // Predicated region
        $region41: #{tpu_custom_call.1} parent=39 // pred_check
          %p1231 = pneg %p152
        $region42: #{tpu_custom_call.1} parent=39 // pred_check_branch
          %1233 = sbr.rel (%p1231) target = $region44
        $region43: #{tpu_custom_call.1} parent=39 // pred_region
          %s1234 = smul.u32 32, %s19
          %1236 = vsyncadd %s1227, 0
          %s1237 = smul.addr %s1234, 4
          %s1238 = scalar_lea.hbm %s5, %s1237
          %s1239 = sshll.u32 %s1230, 4
          %s1240 = int_to_ptr.vmem [resolvable:$true] %s1239
          %s1241 = sshll.u32 %s1238, 4
          %s1242 = int_to_ptr.hbm [resolvable:$true] %s1241
          %1247 = dma.vmem_to_hbm [thread:$0]  %s1240, 2048, %s1242, %s1227, 64, 64, 4
        $region44: #{tpu_custom_call.1} parent=39 // pred_fallthru
          _
      $region40: #{tpu_custom_call.1} parent=5 // pred_fallthru
        _
      %p1248 = scmp.le.s32.totalorder 2, %s14
      // Predicated region
      $region45: #{tpu_custom_call.1} parent=5 // pred_check
        %p1249 = pneg %p1248
      $region46: #{tpu_custom_call.1} parent=5 // pred_check_branch
        %1251 = sbr.rel (%p1249) target = $region48
      $region47: #{tpu_custom_call.1} parent=5 // pred_region
        %s1252 = ssub.s32 %s14, 2
        // Predicated region
        $region49: #{tpu_custom_call.1} parent=47 // pred_check
          %p1253 = pneg %p158
        $region50: #{tpu_custom_call.1} parent=47 // pred_check_branch
          %1255 = sbr.rel (%p1253) target = $region52
        $region51: #{tpu_custom_call.1} parent=47 // pred_region
          %s1256 = sand.u32 %s143, 1
          %s1257 = scalar_lea.sflag [#allocation3], %s1256
          %s1258 = sand.u32 %s143, 1
          %s1259 = smul.addr %s1258, 128
          %s1260 = scalar_lea.vmem [#allocation2], %s1259
          %1262 = dma.done %s1257, 2048
        $region52: #{tpu_custom_call.1} parent=47 // pred_fallthru
          _
      $region48: #{tpu_custom_call.1} parent=5 // pred_fallthru
        _
    $region6: #{tpu_custom_call.1} parent=1 // loop_footer
      %s18 = sadd.s32 1, %s14
    $region7: #{tpu_custom_call.1} parent=1 // loop_footer_branch
      %13 = sbr.rel target = $region3
    $region8: #{tpu_custom_call.1} parent=1 // loop_exit
      _
    %1263 = vsyncpa [#allocation3], 1
    %s1264 = scalar_lea.sflag [#allocation3], 1
    %1265 = vsyncpa %s1264, 1

</llo_original>
